<compile_context>
chip_gen: v7x
topology: tpu7x:2x2x1
jax: 0.10.0
libtpu: 0.0.40
codegen_flags: <defaults>
</compile_context>

<pallas_src>
import jax
import jax.numpy as jnp
from jax.experimental import pallas as pl
from jax.experimental.pallas import tpu as pltpu


def decoder_kernel(col_ref, w1_ref, b1_ref, w2_ref, b2_ref, out_ref):
    # col_ref: (9E, Mblk)  lane-dense im2col slab (row = tap*E + in_ch, pixels on lanes)
    # w1_ref : (E, 9E)     3x3 conv weights, (out_ch, tap*in_ch)
    # b1_ref : (E, 1)      conv bias (f32)
    # w2_ref : (Cup, E)    ConvT weights, Cup = Cout*up*up
    # b2_ref : (Cup, 1)    ConvT bias expanded per (co, u, v) (f32)
    # out_ref: (Cup, Mblk) lane-dense output block
    # conv3x3 as a single K=9E MXU matmul, result already (E, M): no transpose needed.
    y = jnp.dot(w1_ref[...], col_ref[...], preferred_element_type=jnp.float32)  # (E, Mblk)
    y = jnp.maximum(y + b1_ref[...], 0.0)                                       # lane-dense VPU
    y = y.astype(w2_ref.dtype)
    # ConvTranspose(k=stride=up) == per-pixel channel matmul: (Cup,E) @ (E,M).
    out = jnp.dot(w2_ref[...], y, preferred_element_type=jnp.float32)           # (Cup, Mblk)
    out_ref[...] = (out + b2_ref[...]).astype(out_ref.dtype)


def _pick_m_block(M_total, target=512):
    """Pad M to a multiple of 128 and pick a block size that divides it.

    Prefers: n_blocks >= 2 (v7x 2-TC megacore split), M_blk % 256 == 0 (v6e/v7x MXU),
    then the largest block <= target (amortizes ~0.35us/step grid overhead)."""
    M_pad = ((M_total + 127) // 128) * 128
    cands = [m for m in range(128, M_pad + 1, 128) if M_pad % m == 0 and m <= target]
    if not cands:
        cands = [M_pad]  # single (still 128-multiple) block
    def score(m):
        return ((M_pad // m) >= 2, m % 256 == 0, m)
    return M_pad, max(cands, key=score)


def decoder_forward(x, grid_size, params, *, compute_dtype=None, m_block=None):
    """x: (B, N, E) tokens; grid_size=(H, W); returns NCHW (B, Cout, H*up, W*up)."""
    B, N, E = x.shape
    H, W = grid_size
    assert N == H * W
    w1, b1, w2, b2 = params          # w1: (E, E, 3, 3) OIHW ; w2: (E, Cout, up, up) torch IOHW
    C_out, up = w2.shape[1], w2.shape[2]
    Cup = C_out * up * up

    # bf16 operands recommended on v6e/v7x (pass compute_dtype=jnp.bfloat16);
    # default keeps the input dtype so the f32 reference check holds tightly.
    cdt = x.dtype if compute_dtype is None else compute_dtype

    M_total = B * H * W
    if m_block is None:
        M_pad, M_blk = _pick_m_block(M_total)
    else:
        assert m_block % 128 == 0
        M_blk = m_block
        M_pad = ((M_total + M_blk - 1) // M_blk) * M_blk
    n_blocks = M_pad // M_blk

    # ---- glue (fuses into the surrounding jit): pad + lane-dense im2col slab (9E, M) ----
    xh = x.reshape(B, H, W, E)                                        # NHWC
    xp = jnp.pad(xh, ((0, 0), (1, 1), (1, 1), (0, 0)))                # spatial pad = 1
    taps = jnp.stack([xp[:, ky:ky + H, kx:kx + W, :]
                      for ky in range(3) for kx in range(3)], axis=0)  # (9, B, H, W, E)
    col = jnp.transpose(taps, (0, 4, 1, 2, 3)).reshape(9 * E, M_total)  # row = tap*E + in
    if M_pad != M_total:
        col = jnp.pad(col, ((0, 0), (0, M_pad - M_total)))
    col = col.astype(cdt)

    w1k = jnp.transpose(w1, (0, 2, 3, 1)).reshape(E, 9 * E).astype(cdt)   # (out, tap*in)
    b1k = b1.reshape(E, 1).astype(jnp.float32)
    w2t = jnp.transpose(w2, (1, 2, 3, 0)).reshape(Cup, E).astype(cdt)     # (co*u*v, in)
    b2k = jnp.repeat(b2, up * up).reshape(Cup, 1).astype(jnp.float32)

    # ---- Pallas kernel: two MXU matmuls + lane-dense bias/ReLU epilogue ----
    out_t = pl.pallas_call(
        decoder_kernel,
        out_shape=jax.ShapeDtypeStruct((Cup, M_pad), x.dtype),
        grid_spec=pltpu.PrefetchScalarGridSpec(
            num_scalar_prefetch=0,
            grid=(n_blocks,),
            in_specs=[
                pl.BlockSpec((9 * E, M_blk), lambda b: (0, b)),   # im2col slab tile
                pl.BlockSpec((E, 9 * E), lambda b: (0, 0)),       # conv weights (resident)
                pl.BlockSpec((E, 1), lambda b: (0, 0)),           # conv bias
                pl.BlockSpec((Cup, E), lambda b: (0, 0)),         # ConvT weights (resident)
                pl.BlockSpec((Cup, 1), lambda b: (0, 0)),         # ConvT bias
            ],
            out_specs=pl.BlockSpec((Cup, M_blk), lambda b: (0, b)),
        ),
        compiler_params=pltpu.CompilerParams(
            dimension_semantics=("parallel",)),
    )(col, w1k, b1k, w2t, b2k)

    # ---- glue: (Cup, M) -> NCHW (B, Cout, H*up, W*up) ----
    out = out_t[:, :M_total].reshape(C_out, up, up, B, H, W)
    out = jnp.transpose(out, (3, 0, 4, 1, 5, 2)).reshape(B, C_out, H * up, W * up)
    return out


def decoder_reference(x, grid_size, params):
    """Pure-JAX reference matching the PyTorch module exactly."""
    B, N, E = x.shape
    H, W = grid_size
    w1, b1, w2, b2 = params
    C_out, up = w2.shape[1], w2.shape[2]

    xi = jnp.transpose(x, (0, 2, 1)).reshape(B, E, H, W)              # NCHW
    xp = jnp.pad(xi, ((0, 0), (0, 0), (1, 1), (1, 1)))
    y = jnp.zeros((B, E, H, W), jnp.float32)
    for ky in range(3):
        for kx in range(3):
            y = y + jnp.einsum('bihw,oi->bohw',
                               xp[:, :, ky:ky + H, kx:kx + W], w1[:, :, ky, kx])
    y = jnp.maximum(y + b1[None, :, None, None], 0.0)

    o = jnp.einsum('bihw,iouv->bohuwv', y, w2)                        # (B,Cout,H,up,W,up)
    o = o.reshape(B, C_out, H * up, W * up) + b2[None, :, None, None]
    return o


if __name__ == "__main__":
    # Small shapes consistent with the module: tokens (B, N=H*W, E)
    B, H, W = 8, 8, 8
    embed_dim, out_channels, upsample_factor = 32, 4, 2
    N = H * W

    key = jax.random.PRNGKey(0)
    k1, k2, k3, k4, k5 = jax.random.split(key, 5)
    w1 = 0.1 * jax.random.normal(k1, (embed_dim, embed_dim, 3, 3), jnp.float32)        # Conv2d OIHW
    b1 = 0.1 * jax.random.normal(k2, (embed_dim,), jnp.float32)
    w2 = 0.1 * jax.random.normal(k3, (embed_dim, out_channels,
                                      upsample_factor, upsample_factor), jnp.float32)  # ConvT IOHW
    b2 = 0.1 * jax.random.normal(k4, (out_channels,), jnp.float32)
    params = (w1, b1, w2, b2)

    x = jax.random.normal(k5, (B, N, embed_dim), jnp.float32)

    fwd = jax.jit(lambda xx: decoder_forward(xx, (H, W), params))
    out = jax.block_until_ready(fwd(x))

    ref = decoder_reference(x, (H, W), params)
    assert out.shape == (B, out_channels, H * upsample_factor, W * upsample_factor)
    assert jnp.allclose(out, ref, atol=1e-3, rtol=1e-3), "mismatch vs reference"

    print("KERNEL_OK")
</pallas_src>

<mosaic_0001>
module attributes {stable_mosaic.version = 11 : i64} {
  func.func @decoder_kernel(%arg0: i32, %arg1: memref<288x256xf32, #tpu.memory_space<vmem>>, %arg2: memref<32x288xf32, #tpu.memory_space<vmem>>, %arg3: memref<32x1xf32, #tpu.memory_space<vmem>>, %arg4: memref<16x32xf32, #tpu.memory_space<vmem>>, %arg5: memref<16x1xf32, #tpu.memory_space<vmem>>, %arg6: memref<16x256xf32, #tpu.memory_space<vmem>>) attributes {dimension_semantics = [#tpu.dimension_semantics<parallel>], iteration_bounds = array<i64: 2>, scalar_prefetch = 0 : i64, scratch_operands = 0 : i64, tpu.core_type = #tpu.core_type<tc>, window_params = [{transform_indices = @transform_0, window_bounds = array<i64: 288, 256>}, {pipeline_mode = #tpu.pipeline_mode<synchronous>, transform_indices = @transform_1, window_bounds = array<i64: 32, 288>}, {pipeline_mode = #tpu.pipeline_mode<synchronous>, transform_indices = @transform_2, window_bounds = array<i64: 32, 1>}, {pipeline_mode = #tpu.pipeline_mode<synchronous>, transform_indices = @transform_3, window_bounds = array<i64: 16, 32>}, {pipeline_mode = #tpu.pipeline_mode<synchronous>, transform_indices = @transform_4, window_bounds = array<i64: 16, 1>}, {transform_indices = @transform_5, window_bounds = array<i64: 16, 256>}]} {
    %c0 = arith.constant 0 : index
    %c0_0 = arith.constant 0 : index
    %0 = vector.load %arg2[%c0, %c0_0] : memref<32x288xf32, #tpu.memory_space<vmem>>, vector<32x288xf32>
    %c0_1 = arith.constant 0 : index
    %c0_2 = arith.constant 0 : index
    %1 = vector.load %arg1[%c0_1, %c0_2] : memref<288x256xf32, #tpu.memory_space<vmem>>, vector<288x256xf32>
    %cst = arith.constant dense<0.000000e+00> : vector<32x256xf32>
    %2 = tpu.matmul %0, %1, %cst {dimension_numbers = #tpu.dot_dimension_numbers<[1], [0], [0], [1], [0, 0, 1, 1], [], []>} : vector<32x288xf32>, vector<288x256xf32>, vector<32x256xf32> -> vector<32x256xf32>
    %c0_3 = arith.constant 0 : index
    %c0_4 = arith.constant 0 : index
    %3 = vector.load %arg3[%c0_3, %c0_4] : memref<32x1xf32, #tpu.memory_space<vmem>>, vector<32x1xf32>
    %4 = vector.broadcast %3 : vector<32x1xf32> to vector<32x256xf32>
    %5 = arith.addf %2, %4 : vector<32x256xf32>
    %cst_5 = arith.constant 0.000000e+00 : f32
    %6 = vector.broadcast %cst_5 : f32 to vector<32x256xf32>
    %7 = arith.maximumf %5, %6 : vector<32x256xf32>
    %c0_6 = arith.constant 0 : index
    %c0_7 = arith.constant 0 : index
    %8 = vector.load %arg4[%c0_6, %c0_7] : memref<16x32xf32, #tpu.memory_space<vmem>>, vector<16x32xf32>
    %cst_8 = arith.constant dense<0.000000e+00> : vector<16x256xf32>
    %9 = tpu.matmul %8, %7, %cst_8 {dimension_numbers = #tpu.dot_dimension_numbers<[1], [0], [0], [1], [0, 0, 1, 1], [], []>} : vector<16x32xf32>, vector<32x256xf32>, vector<16x256xf32> -> vector<16x256xf32>
    %c0_9 = arith.constant 0 : index
    %c0_10 = arith.constant 0 : index
    %10 = vector.load %arg5[%c0_9, %c0_10] : memref<16x1xf32, #tpu.memory_space<vmem>>, vector<16x1xf32>
    %11 = vector.broadcast %10 : vector<16x1xf32> to vector<16x256xf32>
    %12 = arith.addf %9, %11 : vector<16x256xf32>
    %c0_11 = arith.constant 0 : index
    %c0_12 = arith.constant 0 : index
    %13 = vector.load %arg6[%c0_11, %c0_12] : memref<16x256xf32, #tpu.memory_space<vmem>>, vector<16x256xf32>
    tpu.vector_store %arg6[%c0_11, %c0_12], %12 {strides = array<i32>} : memref<16x256xf32, #tpu.memory_space<vmem>>, vector<16x256xf32>,
    return
  }
  func.func @transform_0(%arg0: i32) -> (i32, i32) {
    %c0_i32 = arith.constant 0 : i32
    %c0_i32_0 = arith.constant 0 : i32
    return %c0_i32, %arg0 : i32, i32
  }
  func.func @transform_1(%arg0: i32) -> (i32, i32) {
    %c0_i32 = arith.constant 0 : i32
    %c0_i32_0 = arith.constant 0 : i32
    %c0_i32_1 = arith.constant 0 : i32
    return %c0_i32, %c0_i32_0 : i32, i32
  }
  func.func @transform_2(%arg0: i32) -> (i32, i32) {
    %c0_i32 = arith.constant 0 : i32
    %c0_i32_0 = arith.constant 0 : i32
    %c0_i32_1 = arith.constant 0 : i32
    return %c0_i32, %c0_i32_0 : i32, i32
  }
  func.func @transform_3(%arg0: i32) -> (i32, i32) {
    %c0_i32 = arith.constant 0 : i32
    %c0_i32_0 = arith.constant 0 : i32
    %c0_i32_1 = arith.constant 0 : i32
    return %c0_i32, %c0_i32_0 : i32, i32
  }
  func.func @transform_4(%arg0: i32) -> (i32, i32) {
    %c0_i32 = arith.constant 0 : i32
    %c0_i32_0 = arith.constant 0 : i32
    %c0_i32_1 = arith.constant 0 : i32
    return %c0_i32, %c0_i32_0 : i32, i32
  }
  func.func @transform_5(%arg0: i32) -> (i32, i32) {
    %c0_i32 = arith.constant 0 : i32
    %c0_i32_0 = arith.constant 0 : i32
    return %c0_i32, %arg0 : i32, i32
  }
}

</mosaic_0001>

<llo_original>
// kernel: _lambda_.1
$region0: #{_lambda_.1}
  #allocation0 [shape = 'u32[]', space=smem, size = 0x4, offset = 0x4, fixed_abs, tag = 'smem constant byte address 0x4 - core index']
  #allocation1 [shape = 'u32[144,128]{1,0:T(1,128)}', space=vmem, size = 0x12000, scoped, tag = 'internal scratch']
  %s0 = inlined_call_operand.vmem [shape: f32[288,512], index: 0, kind: input, shape index: {}]
  %s1 = inlined_call_operand.vmem [shape: f32[32,288], index: 1, kind: input, shape index: {}]
  %s2 = inlined_call_operand.vmem [shape: f32[32,1], index: 2, kind: input, shape index: {}]
  %s3 = inlined_call_operand.vmem [shape: f32[16,32], index: 3, kind: input, shape index: {}]
  %s4 = inlined_call_operand.vmem [shape: f32[16,1], index: 4, kind: input, shape index: {}]
  %s5 = inlined_call_operand.vmem [shape: f32[16,512], index: 5, kind: output, shape index: {}]
  %s6 = sld [smem:[#allocation0]]
  $region95: #{_lambda_.1} parent=0
    _
  %s8 = ssub.s32 1, %s6
  %s9 = scalar_select 0, %s8, %s6
  $region1: #{_lambda_.1} parent=0
    #allocation2 [shape = 'u8[589824]{0}', space=vmem, size = 0x90000, scoped, tag = 'input window, operand 0']
    #allocation3 [shape = 'u8[32768]{0}', space=vmem, size = 0x8000, scoped, tag = 'output window, operand 0']
    loop: start=0, step=1, limit=4
    $region2: #{_lambda_.1} parent=1 // loop_pre_header
      _
    $region3: #{_lambda_.1} parent=1 // loop_header
      %s11 = sphi 0, %s15
      %p12 = scmp.ge.s32.totalorder %s11, 4
      %s21 = sphi 0, %s23
      %s24 = sphi 0, %s21
      %s25 = sphi 0, %s24
      %s41 = sphi 0, %s25
      %s45 = sphi 0, %s45
      %s47 = sphi 0, %s45
      %s48 = sphi 0, %s47
      %s62 = sphi 0, %s48
      %s66 = sphi 0, %s66
      %s68 = sphi 0, %s66
      %s69 = sphi 0, %s68
      %s83 = sphi 0, %s69
      %s87 = sphi 0, %s87
      %s89 = sphi 0, %s87
      %s90 = sphi 0, %s89
      %s104 = sphi 0, %s90
      %s108 = sphi 0, %s108
      %s110 = sphi 0, %s108
      %s111 = sphi 0, %s110
      %s125 = sphi 0, %s111
      %s131 = sphi 0, %s133
      %s134 = sphi 0, %s131
      %s135 = sphi 0, %s134
      %s151 = sphi 0, %s135
    $region4: #{_lambda_.1} parent=1 // loop_header_branch
      %14 = sbr.rel (%p12) target = $region8
    $region5: #{_lambda_.1} parent=1 // loop_body
      %s16 = ssub.s32 %s11, 1
      %s17 = ssub.s32 %s11, 2
      %s18 = sadd.s32 %s11, 1
      %s19 = ssub.s32 %s11, %s18
      %p20 = scmp.eq.s32.totalorder %s19, 0
      %s22 = sadd.s32 %s21, 1
      %s23 = scalar_select %p20, %s21, %s22
      %p26 = pneg %p20
      %p27 = scmp.eq.s32.totalorder %s11, 1
      %p28 = por %p26, %p27
      %p29 = scmp.ne.s32.totalorder %s21, %s24
      %p30 = scmp.eq.s32.totalorder %s11, 0
      %p31 = por %p29, %p30
      %p32 = scmp.ne.s32.totalorder %s21, %s24
      %p33 = scmp.eq.s32.totalorder %s16, 1
      %p34 = por %p32, %p33
      %p35 = scmp.ne.s32.totalorder %s24, %s25
      %p36 = scmp.eq.s32.totalorder %s16, 0
      %p37 = por %p35, %p36
      %p38 = scmp.ne.s32.totalorder %s24, %s25
      %p39 = scmp.eq.s32.totalorder %s17, 1
      %p40 = por %p38, %p39
      %p42 = scmp.ne.s32.totalorder %s25, %s41
      %p43 = scmp.eq.s32.totalorder %s17, 0
      %p44 = por %p42, %p43
      %s46 = sadd.s32 %s45, 1
      %p49 = scmp.eq.s32.totalorder %s11, 1
      %p50 = scmp.ne.s32.totalorder %s45, %s47
      %p51 = scmp.eq.s32.totalorder %s11, 0
      %p52 = por %p50, %p51
      %p53 = scmp.ne.s32.totalorder %s45, %s47
      %p54 = scmp.eq.s32.totalorder %s16, 1
      %p55 = por %p53, %p54
      %p56 = scmp.ne.s32.totalorder %s47, %s48
      %p57 = scmp.eq.s32.totalorder %s16, 0
      %p58 = por %p56, %p57
      %p59 = scmp.ne.s32.totalorder %s47, %s48
      %p60 = scmp.eq.s32.totalorder %s17, 1
      %p61 = por %p59, %p60
      %p63 = scmp.ne.s32.totalorder %s48, %s62
      %p64 = scmp.eq.s32.totalorder %s17, 0
      %p65 = por %p63, %p64
      %s67 = sadd.s32 %s66, 1
      %p70 = scmp.eq.s32.totalorder %s11, 1
      %p71 = scmp.ne.s32.totalorder %s66, %s68
      %p72 = scmp.eq.s32.totalorder %s11, 0
      %p73 = por %p71, %p72
      %p74 = scmp.ne.s32.totalorder %s66, %s68
      %p75 = scmp.eq.s32.totalorder %s16, 1
      %p76 = por %p74, %p75
      %p77 = scmp.ne.s32.totalorder %s68, %s69
      %p78 = scmp.eq.s32.totalorder %s16, 0
      %p79 = por %p77, %p78
      %p80 = scmp.ne.s32.totalorder %s68, %s69
      %p81 = scmp.eq.s32.totalorder %s17, 1
      %p82 = por %p80, %p81
      %p84 = scmp.ne.s32.totalorder %s69, %s83
      %p85 = scmp.eq.s32.totalorder %s17, 0
      %p86 = por %p84, %p85
      %s88 = sadd.s32 %s87, 1
      %p91 = scmp.eq.s32.totalorder %s11, 1
      %p92 = scmp.ne.s32.totalorder %s87, %s89
      %p93 = scmp.eq.s32.totalorder %s11, 0
      %p94 = por %p92, %p93
      %p95 = scmp.ne.s32.totalorder %s87, %s89
      %p96 = scmp.eq.s32.totalorder %s16, 1
      %p97 = por %p95, %p96
      %p98 = scmp.ne.s32.totalorder %s89, %s90
      %p99 = scmp.eq.s32.totalorder %s16, 0
      %p100 = por %p98, %p99
      %p101 = scmp.ne.s32.totalorder %s89, %s90
      %p102 = scmp.eq.s32.totalorder %s17, 1
      %p103 = por %p101, %p102
      %p105 = scmp.ne.s32.totalorder %s90, %s104
      %p106 = scmp.eq.s32.totalorder %s17, 0
      %p107 = por %p105, %p106
      %s109 = sadd.s32 %s108, 1
      %p112 = scmp.eq.s32.totalorder %s11, 1
      %p113 = scmp.ne.s32.totalorder %s108, %s110
      %p114 = scmp.eq.s32.totalorder %s11, 0
      %p115 = por %p113, %p114
      %p116 = scmp.ne.s32.totalorder %s108, %s110
      %p117 = scmp.eq.s32.totalorder %s16, 1
      %p118 = por %p116, %p117
      %p119 = scmp.ne.s32.totalorder %s110, %s111
      %p120 = scmp.eq.s32.totalorder %s16, 0
      %p121 = por %p119, %p120
      %p122 = scmp.ne.s32.totalorder %s110, %s111
      %p123 = scmp.eq.s32.totalorder %s17, 1
      %p124 = por %p122, %p123
      %p126 = scmp.ne.s32.totalorder %s111, %s125
      %p127 = scmp.eq.s32.totalorder %s17, 0
      %p128 = por %p126, %p127
      %s129 = ssub.s32 %s11, %s18
      %p130 = scmp.eq.s32.totalorder %s129, 0
      %s132 = sadd.s32 %s131, 1
      %s133 = scalar_select %p130, %s131, %s132
      %p136 = pneg %p130
      %p137 = scmp.eq.s32.totalorder %s11, 1
      %p138 = por %p136, %p137
      %p139 = scmp.ne.s32.totalorder %s131, %s134
      %p140 = scmp.eq.s32.totalorder %s11, 0
      %p141 = por %p139, %p140
      %p142 = scmp.ne.s32.totalorder %s131, %s134
      %p143 = scmp.eq.s32.totalorder %s16, 1
      %p144 = por %p142, %p143
      %p145 = scmp.ne.s32.totalorder %s134, %s135
      %p146 = scmp.eq.s32.totalorder %s16, 0
      %p147 = por %p145, %p146
      %p148 = scmp.ne.s32.totalorder %s134, %s135
      %p149 = scmp.eq.s32.totalorder %s17, 1
      %p150 = por %p148, %p149
      %p152 = scmp.ne.s32.totalorder %s135, %s151
      %p153 = scmp.eq.s32.totalorder %s17, 0
      %p154 = por %p152, %p153
      %p155 = scmp.le.s32.totalorder 1, %s11
      %p156 = scmp.lt.s32.totalorder %s11, 3
      %p157 = pnand %p155, %p156
      %p158 = pneg %p157
      // Predicated region
      $region9: #{_lambda_.1} parent=5 // pred_check
        _
      $region10: #{_lambda_.1} parent=5 // pred_check_branch
        %160 = sbr.rel (%p157) target = $region12
      $region11: #{_lambda_.1} parent=5 // pred_region
        %s161 = ssub.s32 %s11, 1
        // Predicated region
        $region13: #{_lambda_.1} parent=11 // pred_check
          %p162 = pneg %p58
        $region14: #{_lambda_.1} parent=11 // pred_check_branch
          %164 = sbr.rel (%p162) target = $region16
        $region15: #{_lambda_.1} parent=11 // pred_region
          _
        $region16: #{_lambda_.1} parent=11 // pred_fallthru
          _
        // Predicated region
        $region17: #{_lambda_.1} parent=11 // pred_check
          %p165 = pneg %p79
        $region18: #{_lambda_.1} parent=11 // pred_check_branch
          %167 = sbr.rel (%p165) target = $region20
        $region19: #{_lambda_.1} parent=11 // pred_region
          _
        $region20: #{_lambda_.1} parent=11 // pred_fallthru
          _
        // Predicated region
        $region21: #{_lambda_.1} parent=11 // pred_check
          %p168 = pneg %p100
        $region22: #{_lambda_.1} parent=11 // pred_check_branch
          %170 = sbr.rel (%p168) target = $region24
        $region23: #{_lambda_.1} parent=11 // pred_region
          _
        $region24: #{_lambda_.1} parent=11 // pred_fallthru
          _
        // Predicated region
        $region25: #{_lambda_.1} parent=11 // pred_check
          %p171 = pneg %p121
        $region26: #{_lambda_.1} parent=11 // pred_check_branch
          %173 = sbr.rel (%p171) target = $region28
        $region27: #{_lambda_.1} parent=11 // pred_region
          _
        $region28: #{_lambda_.1} parent=11 // pred_fallthru
          _
      $region12: #{_lambda_.1} parent=5 // pred_fallthru
        _
      %p174 = scmp.lt.s32.totalorder %s11, 2
      // Predicated region
      $region29: #{_lambda_.1} parent=5 // pred_check
        %p175 = pneg %p174
      $region30: #{_lambda_.1} parent=5 // pred_check_branch
        %177 = sbr.rel (%p175) target = $region32
      $region31: #{_lambda_.1} parent=5 // pred_region
        // Predicated region
        $region33: #{_lambda_.1} parent=31 // pred_check
          %p178 = pneg %p31
        $region34: #{_lambda_.1} parent=31 // pred_check_branch
          %180 = sbr.rel (%p178) target = $region36
        $region35: #{_lambda_.1} parent=31 // pred_region
          %s181 = sand.u32 %s21, 1
          %s182 = sand.u32 %s21, 1
          %s183 = smul.addr %s182, 576
          %s184 = scalar_lea.vmem [#allocation2], %s183
          %s185 = smul.u32 2, %s11
          %s186 = smul.addr %s185, 8
          %s187 = scalar_lea.vmem %s0, %s186
          // Predicated region
          $region37: #{_lambda_.1} parent=35 // pred_check
            _
          $region38: #{_lambda_.1} parent=35 // pred_check_branch
            %189 = sbr.rel (0) target = $region40
          $region39: #{_lambda_.1} parent=35 // pred_region
            // Predicated region
            $region41: #{_lambda_.1} parent=39 // pred_check
              _
            $region42: #{_lambda_.1} parent=39 // pred_check_branch
              %191 = sbr.rel (0) target = $region44
            $region43: #{_lambda_.1} parent=39 // pred_region
              loop: start=0, step=1, limit=1
              $region45: #{_lambda_.1} parent=43 // loop_pre_header
                _
              $region46: #{_lambda_.1} parent=43 // loop_header
                %s193 = sphi 0, %s197
                %p194 = scmp.ge.s32.totalorder %s193, 1
                %s198 = sphi %s187, %s187
                %s199 = sphi %s184, %s184
              $region47: #{_lambda_.1} parent=43 // loop_header_branch
                %196 = sbr.rel (%p194) target = $region51
              $region48: #{_lambda_.1} parent=43 // loop_body
                %v200 = vld [vmem:[%s198] sm:$0xff]
                %201 = vst [vmem:[%s199] sm:$0xff] %v200
                %v202 = vld [vmem:[%s198 + $0x8] sm:$0xff]
                %203 = vst [vmem:[%s199 + $0x8] sm:$0xff] %v202
                %v204 = vld [vmem:[%s198 + $0x20] sm:$0xff]
                %205 = vst [vmem:[%s199 + $0x10] sm:$0xff] %v204
                %v206 = vld [vmem:[%s198 + $0x28] sm:$0xff]
                %207 = vst [vmem:[%s199 + $0x18] sm:$0xff] %v206
                %v208 = vld [vmem:[%s198 + $0x40] sm:$0xff]
                %209 = vst [vmem:[%s199 + $0x20] sm:$0xff] %v208
                %v210 = vld [vmem:[%s198 + $0x48] sm:$0xff]
                %211 = vst [vmem:[%s199 + $0x28] sm:$0xff] %v210
                %v212 = vld [vmem:[%s198 + $0x60] sm:$0xff]
                %213 = vst [vmem:[%s199 + $0x30] sm:$0xff] %v212
                %v214 = vld [vmem:[%s198 + $0x68] sm:$0xff]
                %215 = vst [vmem:[%s199 + $0x38] sm:$0xff] %v214
                %v216 = vld [vmem:[%s198 + $0x80] sm:$0xff]
                %217 = vst [vmem:[%s199 + $0x40] sm:$0xff] %v216
                %v218 = vld [vmem:[%s198 + $0x88] sm:$0xff]
                %219 = vst [vmem:[%s199 + $0x48] sm:$0xff] %v218
                %v220 = vld [vmem:[%s198 + $0xa0] sm:$0xff]
                %221 = vst [vmem:[%s199 + $0x50] sm:$0xff] %v220
                %v222 = vld [vmem:[%s198 + $0xa8] sm:$0xff]
                %223 = vst [vmem:[%s199 + $0x58] sm:$0xff] %v222
                %v224 = vld [vmem:[%s198 + $0xc0] sm:$0xff]
                %225 = vst [vmem:[%s199 + $0x60] sm:$0xff] %v224
                %v226 = vld [vmem:[%s198 + $0xc8] sm:$0xff]
                %227 = vst [vmem:[%s199 + $0x68] sm:$0xff] %v226
                %v228 = vld [vmem:[%s198 + $0xe0] sm:$0xff]
                %229 = vst [vmem:[%s199 + $0x70] sm:$0xff] %v228
                %v230 = vld [vmem:[%s198 + $0xe8] sm:$0xff]
                %231 = vst [vmem:[%s199 + $0x78] sm:$0xff] %v230
                %v232 = vld [vmem:[%s198 + $0x100] sm:$0xff]
                %233 = vst [vmem:[%s199 + $0x80] sm:$0xff] %v232
                %v234 = vld [vmem:[%s198 + $0x108] sm:$0xff]
                %235 = vst [vmem:[%s199 + $0x88] sm:$0xff] %v234
                %v236 = vld [vmem:[%s198 + $0x120] sm:$0xff]
                %237 = vst [vmem:[%s199 + $0x90] sm:$0xff] %v236
                %v238 = vld [vmem:[%s198 + $0x128] sm:$0xff]
                %239 = vst [vmem:[%s199 + $0x98] sm:$0xff] %v238
                %v240 = vld [vmem:[%s198 + $0x140] sm:$0xff]
                %241 = vst [vmem:[%s199 + $0xa0] sm:$0xff] %v240
                %v242 = vld [vmem:[%s198 + $0x148] sm:$0xff]
                %243 = vst [vmem:[%s199 + $0xa8] sm:$0xff] %v242
                %v244 = vld [vmem:[%s198 + $0x160] sm:$0xff]
                %245 = vst [vmem:[%s199 + $0xb0] sm:$0xff] %v244
                %v246 = vld [vmem:[%s198 + $0x168] sm:$0xff]
                %247 = vst [vmem:[%s199 + $0xb8] sm:$0xff] %v246
                %v248 = vld [vmem:[%s198 + $0x180] sm:$0xff]
                %249 = vst [vmem:[%s199 + $0xc0] sm:$0xff] %v248
                %v250 = vld [vmem:[%s198 + $0x188] sm:$0xff]
                %251 = vst [vmem:[%s199 + $0xc8] sm:$0xff] %v250
                %v252 = vld [vmem:[%s198 + $0x1a0] sm:$0xff]
                %253 = vst [vmem:[%s199 + $0xd0] sm:$0xff] %v252
                %v254 = vld [vmem:[%s198 + $0x1a8] sm:$0xff]
                %255 = vst [vmem:[%s199 + $0xd8] sm:$0xff] %v254
                %v256 = vld [vmem:[%s198 + $0x1c0] sm:$0xff]
                %257 = vst [vmem:[%s199 + $0xe0] sm:$0xff] %v256
                %v258 = vld [vmem:[%s198 + $0x1c8] sm:$0xff]
                %259 = vst [vmem:[%s199 + $0xe8] sm:$0xff] %v258
                %v260 = vld [vmem:[%s198 + $0x1e0] sm:$0xff]
                %261 = vst [vmem:[%s199 + $0xf0] sm:$0xff] %v260
                %v262 = vld [vmem:[%s198 + $0x1e8] sm:$0xff]
                %263 = vst [vmem:[%s199 + $0xf8] sm:$0xff] %v262
                %v264 = vld [vmem:[%s198 + $0x200] sm:$0xff]
                %265 = vst [vmem:[%s199 + $0x100] sm:$0xff] %v264
                %v266 = vld [vmem:[%s198 + $0x208] sm:$0xff]
                %267 = vst [vmem:[%s199 + $0x108] sm:$0xff] %v266
                %v268 = vld [vmem:[%s198 + $0x220] sm:$0xff]
                %269 = vst [vmem:[%s199 + $0x110] sm:$0xff] %v268
                %v270 = vld [vmem:[%s198 + $0x228] sm:$0xff]
                %271 = vst [vmem:[%s199 + $0x118] sm:$0xff] %v270
                %v272 = vld [vmem:[%s198 + $0x240] sm:$0xff]
                %273 = vst [vmem:[%s199 + $0x120] sm:$0xff] %v272
                %v274 = vld [vmem:[%s198 + $0x248] sm:$0xff]
                %275 = vst [vmem:[%s199 + $0x128] sm:$0xff] %v274
                %v276 = vld [vmem:[%s198 + $0x260] sm:$0xff]
                %277 = vst [vmem:[%s199 + $0x130] sm:$0xff] %v276
                %v278 = vld [vmem:[%s198 + $0x268] sm:$0xff]
                %279 = vst [vmem:[%s199 + $0x138] sm:$0xff] %v278
                %v280 = vld [vmem:[%s198 + $0x280] sm:$0xff]
                %281 = vst [vmem:[%s199 + $0x140] sm:$0xff] %v280
                %v282 = vld [vmem:[%s198 + $0x288] sm:$0xff]
                %283 = vst [vmem:[%s199 + $0x148] sm:$0xff] %v282
                %v284 = vld [vmem:[%s198 + $0x2a0] sm:$0xff]
                %285 = vst [vmem:[%s199 + $0x150] sm:$0xff] %v284
                %v286 = vld [vmem:[%s198 + $0x2a8] sm:$0xff]
                %287 = vst [vmem:[%s199 + $0x158] sm:$0xff] %v286
                %v288 = vld [vmem:[%s198 + $0x2c0] sm:$0xff]
                %289 = vst [vmem:[%s199 + $0x160] sm:$0xff] %v288
                %v290 = vld [vmem:[%s198 + $0x2c8] sm:$0xff]
                %291 = vst [vmem:[%s199 + $0x168] sm:$0xff] %v290
                %v292 = vld [vmem:[%s198 + $0x2e0] sm:$0xff]
                %293 = vst [vmem:[%s199 + $0x170] sm:$0xff] %v292
                %v294 = vld [vmem:[%s198 + $0x2e8] sm:$0xff]
                %295 = vst [vmem:[%s199 + $0x178] sm:$0xff] %v294
                %v296 = vld [vmem:[%s198 + $0x300] sm:$0xff]
                %297 = vst [vmem:[%s199 + $0x180] sm:$0xff] %v296
                %v298 = vld [vmem:[%s198 + $0x308] sm:$0xff]
                %299 = vst [vmem:[%s199 + $0x188] sm:$0xff] %v298
                %v300 = vld [vmem:[%s198 + $0x320] sm:$0xff]
                %301 = vst [vmem:[%s199 + $0x190] sm:$0xff] %v300
                %v302 = vld [vmem:[%s198 + $0x328] sm:$0xff]
                %303 = vst [vmem:[%s199 + $0x198] sm:$0xff] %v302
                %v304 = vld [vmem:[%s198 + $0x340] sm:$0xff]
                %305 = vst [vmem:[%s199 + $0x1a0] sm:$0xff] %v304
                %v306 = vld [vmem:[%s198 + $0x348] sm:$0xff]
                %307 = vst [vmem:[%s199 + $0x1a8] sm:$0xff] %v306
                %v308 = vld [vmem:[%s198 + $0x360] sm:$0xff]
                %309 = vst [vmem:[%s199 + $0x1b0] sm:$0xff] %v308
                %v310 = vld [vmem:[%s198 + $0x368] sm:$0xff]
                %311 = vst [vmem:[%s199 + $0x1b8] sm:$0xff] %v310
                %v312 = vld [vmem:[%s198 + $0x380] sm:$0xff]
                %313 = vst [vmem:[%s199 + $0x1c0] sm:$0xff] %v312
                %v314 = vld [vmem:[%s198 + $0x388] sm:$0xff]
                %315 = vst [vmem:[%s199 + $0x1c8] sm:$0xff] %v314
                %v316 = vld [vmem:[%s198 + $0x3a0] sm:$0xff]
                %317 = vst [vmem:[%s199 + $0x1d0] sm:$0xff] %v316
                %v318 = vld [vmem:[%s198 + $0x3a8] sm:$0xff]
                %319 = vst [vmem:[%s199 + $0x1d8] sm:$0xff] %v318
                %v320 = vld [vmem:[%s198 + $0x3c0] sm:$0xff]
                %321 = vst [vmem:[%s199 + $0x1e0] sm:$0xff] %v320
                %v322 = vld [vmem:[%s198 + $0x3c8] sm:$0xff]
                %323 = vst [vmem:[%s199 + $0x1e8] sm:$0xff] %v322
                %v324 = vld [vmem:[%s198 + $0x3e0] sm:$0xff]
                %325 = vst [vmem:[%s199 + $0x1f0] sm:$0xff] %v324
                %v326 = vld [vmem:[%s198 + $0x3e8] sm:$0xff]
                %327 = vst [vmem:[%s199 + $0x1f8] sm:$0xff] %v326
                %v328 = vld [vmem:[%s198 + $0x400] sm:$0xff]
                %329 = vst [vmem:[%s199 + $0x200] sm:$0xff] %v328
                %v330 = vld [vmem:[%s198 + $0x408] sm:$0xff]
                %331 = vst [vmem:[%s199 + $0x208] sm:$0xff] %v330
                %v332 = vld [vmem:[%s198 + $0x420] sm:$0xff]
                %333 = vst [vmem:[%s199 + $0x210] sm:$0xff] %v332
                %v334 = vld [vmem:[%s198 + $0x428] sm:$0xff]
                %335 = vst [vmem:[%s199 + $0x218] sm:$0xff] %v334
                %v336 = vld [vmem:[%s198 + $0x440] sm:$0xff]
                %337 = vst [vmem:[%s199 + $0x220] sm:$0xff] %v336
                %v338 = vld [vmem:[%s198 + $0x448] sm:$0xff]
                %339 = vst [vmem:[%s199 + $0x228] sm:$0xff] %v338
                %v340 = vld [vmem:[%s198 + $0x460] sm:$0xff]
                %341 = vst [vmem:[%s199 + $0x230] sm:$0xff] %v340
                %v342 = vld [vmem:[%s198 + $0x468] sm:$0xff]
                %343 = vst [vmem:[%s199 + $0x238] sm:$0xff] %v342
              $region49: #{_lambda_.1} parent=43 // loop_footer
                %s197 = sadd.s32 1, %s193
              $region50: #{_lambda_.1} parent=43 // loop_footer_branch
                %192 = sbr.rel target = $region46
              $region51: #{_lambda_.1} parent=43 // loop_exit
                _
            $region44: #{_lambda_.1} parent=39 // pred_fallthru
              _
            // Predicated region
            $region52: #{_lambda_.1} parent=39 // pred_check
              _
            $region53: #{_lambda_.1} parent=39 // pred_check_branch
              %345 = sbr.rel target = $region55
            $region54: #{_lambda_.1} parent=39 // pred_region
              _
            $region55: #{_lambda_.1} parent=39 // pred_fallthru
              _
          $region40: #{_lambda_.1} parent=35 // pred_fallthru
            _
          %346 = vnop
        $region36: #{_lambda_.1} parent=31 // pred_fallthru
          _
      $region32: #{_lambda_.1} parent=5 // pred_fallthru
        _
      %p347 = scmp.le.s32.totalorder 1, %s11
      %p348 = scmp.lt.s32.totalorder %s11, 3
      %p349 = pnand %p347, %p348
      %p350 = pneg %p349
      // Predicated region
      $region56: #{_lambda_.1} parent=5 // pred_check
        _
      $region57: #{_lambda_.1} parent=5 // pred_check_branch
        %352 = sbr.rel (%p349) target = $region59
      $region58: #{_lambda_.1} parent=5 // pred_region
        %s353 = ssub.s32 %s11, 1
        %s354 = sand.u32 %s24, 1
        %s355 = sand.u32 %s24, 1
        %s356 = smul.addr %s355, 576
        %s357 = scalar_lea.vmem [#allocation2], %s356
        // Predicated region
        $region60: #{_lambda_.1} parent=58 // pred_check
          %p358 = pneg %p37
        $region61: #{_lambda_.1} parent=58 // pred_check_branch
          %360 = sbr.rel (%p358) target = $region63
        $region62: #{_lambda_.1} parent=58 // pred_region
          _
        $region63: #{_lambda_.1} parent=58 // pred_fallthru
          _
        %s361 = sand.u32 %s24, 1
        %s362 = sand.u32 %s24, 1
        %s363 = smul.addr %s362, 576
        %s364 = scalar_lea.vmem [#allocation2], %s363
        %p365 = pneg %p37
        %p366 = pneg %p34
        %p367 = pneg %p58
        %p368 = pneg %p55
        %p369 = pneg %p79
        %p370 = pneg %p76
        %p371 = pneg %p100
        %p372 = pneg %p97
        %p373 = pneg %p121
        %p374 = pneg %p118
        %p375 = pneg %p147
        %p376 = pneg %p144
        %s377 = sand.u32 %s134, 1
        %s378 = sand.u32 %s134, 1
        %s379 = smul.addr %s378, 32
        %s380 = scalar_lea.vmem [#allocation3], %s379
        %s381 = smul.u32 2, %s16
        %s382 = smul.u32 2, %s16
        %v383 = vld [vmem:[%s1] sm:$0xff]
        %v384 = vld [vmem:[%s1 + $0x8] sm:$0xff]
        %v385 = vld [vmem:[%s1 + $0x10] sm:$0xff]
        %v386 = vld [vmem:[%s1 + $0x18] sm:$0xff]
        %v387 = vld [vmem:[%s1 + $0x20] sm:$0xff]
        %v388 = vld [vmem:[%s1 + $0x28] sm:$0xff]
        %v389 = vld [vmem:[%s1 + $0x30] sm:$0xff]
        %v390 = vld [vmem:[%s1 + $0x38] sm:$0xff]
        %v391 = vld [vmem:[%s1 + $0x40] sm:$0xff]
        %v392 = vld [vmem:[%s1 + $0x48] sm:$0xff]
        %v393 = vld [vmem:[%s1 + $0x50] sm:$0xff]
        %v394 = vld [vmem:[%s1 + $0x58] sm:$0xff]
        %v395 = vld [vmem:[%s357] sm:$0xff]
        %v396 = vld [vmem:[%s357 + $0x8] sm:$0xff]
        %v397 = vld [vmem:[%s357 + $0x10] sm:$0xff]
        %v398 = vld [vmem:[%s357 + $0x18] sm:$0xff]
        %v399 = vld [vmem:[%s357 + $0x20] sm:$0xff]
        %v400 = vld [vmem:[%s357 + $0x28] sm:$0xff]
        %v401 = vld [vmem:[%s357 + $0x30] sm:$0xff]
        %v402 = vld [vmem:[%s357 + $0x38] sm:$0xff]
        %v403 = vld [vmem:[%s357 + $0x40] sm:$0xff]
        %v404 = vld [vmem:[%s357 + $0x48] sm:$0xff]
        %v405 = vld [vmem:[%s357 + $0x50] sm:$0xff]
        %v406 = vld [vmem:[%s357 + $0x58] sm:$0xff]
        %v407 = vld [vmem:[%s357 + $0x60] sm:$0xff]
        %v408 = vld [vmem:[%s357 + $0x68] sm:$0xff]
        %v409 = vld [vmem:[%s357 + $0x70] sm:$0xff]
        %v410 = vld [vmem:[%s357 + $0x78] sm:$0xff]
        %v411 = vld [vmem:[%s357 + $0x80] sm:$0xff]
        %v412 = vld [vmem:[%s357 + $0x88] sm:$0xff]
        %v413 = vld [vmem:[%s357 + $0x90] sm:$0xff]
        %v414 = vld [vmem:[%s357 + $0x98] sm:$0xff]
        %v415 = vld [vmem:[%s357 + $0xa0] sm:$0xff]
        %v416 = vld [vmem:[%s357 + $0xa8] sm:$0xff]
        %v417 = vld [vmem:[%s357 + $0xb0] sm:$0xff]
        %v418 = vld [vmem:[%s357 + $0xb8] sm:$0xff]
        %v419 = vld [vmem:[%s357 + $0xc0] sm:$0xff]
        %v420 = vld [vmem:[%s357 + $0xc8] sm:$0xff]
        %v421 = vld [vmem:[%s357 + $0xd0] sm:$0xff]
        %v422 = vld [vmem:[%s357 + $0xd8] sm:$0xff]
        %v423 = vld [vmem:[%s357 + $0xe0] sm:$0xff]
        %v424 = vld [vmem:[%s357 + $0xe8] sm:$0xff]
        %v425 = vld [vmem:[%s357 + $0xf0] sm:$0xff]
        %v426 = vld [vmem:[%s357 + $0xf8] sm:$0xff]
        %v427 = vld [vmem:[%s357 + $0x100] sm:$0xff]
        %v428 = vld [vmem:[%s357 + $0x108] sm:$0xff]
        %v429 = vld [vmem:[%s357 + $0x110] sm:$0xff]
        %v430 = vld [vmem:[%s357 + $0x118] sm:$0xff]
        %v431 = vld [vmem:[%s357 + $0x120] sm:$0xff]
        %v432 = vld [vmem:[%s357 + $0x128] sm:$0xff]
        %v433 = vld [vmem:[%s357 + $0x130] sm:$0xff]
        %v434 = vld [vmem:[%s357 + $0x138] sm:$0xff]
        %v435 = vld [vmem:[%s357 + $0x140] sm:$0xff]
        %v436 = vld [vmem:[%s357 + $0x148] sm:$0xff]
        %v437 = vld [vmem:[%s357 + $0x150] sm:$0xff]
        %v438 = vld [vmem:[%s357 + $0x158] sm:$0xff]
        %v439 = vld [vmem:[%s357 + $0x160] sm:$0xff]
        %v440 = vld [vmem:[%s357 + $0x168] sm:$0xff]
        %v441 = vld [vmem:[%s357 + $0x170] sm:$0xff]
        %v442 = vld [vmem:[%s357 + $0x178] sm:$0xff]
        %v443 = vld [vmem:[%s357 + $0x180] sm:$0xff]
        %v444 = vld [vmem:[%s357 + $0x188] sm:$0xff]
        %v445 = vld [vmem:[%s357 + $0x190] sm:$0xff]
        %v446 = vld [vmem:[%s357 + $0x198] sm:$0xff]
        %v447 = vld [vmem:[%s357 + $0x1a0] sm:$0xff]
        %v448 = vld [vmem:[%s357 + $0x1a8] sm:$0xff]
        %v449 = vld [vmem:[%s357 + $0x1b0] sm:$0xff]
        %v450 = vld [vmem:[%s357 + $0x1b8] sm:$0xff]
        %v451 = vld [vmem:[%s357 + $0x1c0] sm:$0xff]
        %v452 = vld [vmem:[%s357 + $0x1c8] sm:$0xff]
        %v453 = vld [vmem:[%s357 + $0x1d0] sm:$0xff]
        %v454 = vld [vmem:[%s357 + $0x1d8] sm:$0xff]
        %v455 = vld [vmem:[%s357 + $0x1e0] sm:$0xff]
        %v456 = vld [vmem:[%s357 + $0x1e8] sm:$0xff]
        %v457 = vld [vmem:[%s357 + $0x1f0] sm:$0xff]
        %v458 = vld [vmem:[%s357 + $0x1f8] sm:$0xff]
        %v459 = vld [vmem:[%s357 + $0x200] sm:$0xff]
        %v460 = vld [vmem:[%s357 + $0x208] sm:$0xff]
        %v461 = vld [vmem:[%s357 + $0x210] sm:$0xff]
        %v462 = vld [vmem:[%s357 + $0x218] sm:$0xff]
        %v463 = vld [vmem:[%s357 + $0x220] sm:$0xff]
        %v464 = vld [vmem:[%s357 + $0x228] sm:$0xff]
        %v465 = vld [vmem:[%s357 + $0x230] sm:$0xff]
        %v466 = vld [vmem:[%s357 + $0x238] sm:$0xff]
        %v467 = vld [vmem:[%s2] sm:$0xff]
        %v468 = vld [vmem:[%s2 + $0x8] sm:$0xff]
        %v469 = vld [vmem:[%s2 + $0x10] sm:$0xff]
        %v470 = vld [vmem:[%s2 + $0x18] sm:$0xff]
        %472 = vset.pattern.permute.xlu0 0
        %473 = vperm.xlu0 %472, %v467
        %v474 = vpop.permute.xlu0 %473
        %477 = vset.pattern.permute.xlu0 0
        %478 = vperm.xlu0 %477, %v468
        %v479 = vpop.permute.xlu0 %478
        %482 = vset.pattern.permute.xlu0 0
        %483 = vperm.xlu0 %482, %v469
        %v484 = vpop.permute.xlu0 %483
        %487 = vset.pattern.permute.xlu0 0
        %488 = vperm.xlu0 %487, %v470
        %v489 = vpop.permute.xlu0 %488
        %vm491 = vcmask 261120
        %v493 = vsel %vm491, %v385, 0
        %v496 = vsel %vm491, %v388, 0
        %v499 = vsel %vm491, %v391, 0
        %v502 = vsel %vm491, %v394, 0
        %504 = vmatprep.subr.mxu0 %v396
        %505 = vmatpush1.msra.mxu0 %v395
        %506 = vmatprep.subr.mxu0 %v398
        %507 = vmatpush1.msra.mxu0 %v397
        %508 = vmatprep.subr.mxu0 %v400
        %509 = vmatpush1.msra.mxu0 %v399
        %510 = vmatprep.subr.mxu0 %v402
        %511 = vmatpush1.msra.mxu0 %v401
        %512 = vmatprep.subr.mxu0 %v404
        %513 = vmatpush1.msra.mxu0 %v403
        %514 = vmatprep.subr.mxu0 %v406
        %515 = vmatpush1.msra.mxu0 %v405
        %516 = vmatprep.subr.mxu0 %v408
        %517 = vmatpush1.msra.mxu0 %v407
        %518 = vmatprep.subr.mxu0 %v410
        %519 = vmatpush1.msra.mxu0 %v409
        %520 = vmatprep.subr.mxu0 %v412
        %521 = vmatpush1.msra.mxu0 %v411
        %522 = vmatprep.subr.mxu0 %v414
        %523 = vmatpush1.msra.mxu0 %v413
        %524 = vmatprep.subr.mxu0 %v416
        %525 = vmatpush1.msra.mxu0 %v415
        %526 = vmatprep.subr.mxu0 %v418
        %527 = vmatpush1.msra.mxu0 %v417
        %528 = vmatprep.subr.mxu0 %v420
        %529 = vmatpush1.msra.mxu0 %v419
        %530 = vmatprep.subr.mxu0 %v422
        %531 = vmatpush1.msra.mxu0 %v421
        %532 = vmatprep.subr.mxu0 %v424
        %533 = vmatpush1.msra.mxu0 %v423
        %534 = vmatprep.subr.mxu0 %v426
        %535 = vmatpush1.msra.mxu0 %v425
        %536 = vmatprep.subr.mxu0 %v428
        %537 = vmatpush1.msra.mxu0 %v427
        %538 = vmatprep.subr.mxu0 %v430
        %539 = vmatpush1.msra.mxu0 %v429
        %540 = vmatprep.subr.mxu0 %v432
        %541 = vmatpush1.msra.mxu0 %v431
        %542 = vmatprep.subr.mxu0 %v434
        %543 = vmatpush1.msra.mxu0 %v433
        %544 = vmatprep.subr.mxu0 %v436
        %545 = vmatpush1.msra.mxu0 %v435
        %546 = vmatprep.subr.mxu0 %v438
        %547 = vmatpush1.msra.mxu0 %v437
        %548 = vmatprep.subr.mxu0 %v440
        %549 = vmatpush1.msra.mxu0 %v439
        %550 = vmatprep.subr.mxu0 %v442
        %551 = vmatpush1.msra.mxu0 %v441
        %552 = vmatprep.subr.mxu0 %v444
        %553 = vmatpush1.msra.mxu0 %v443
        %554 = vmatprep.subr.mxu0 %v446
        %555 = vmatpush1.msra.mxu0 %v445
        %556 = vmatprep.subr.mxu0 %v448
        %557 = vmatpush1.msra.mxu0 %v447
        %558 = vmatprep.subr.mxu0 %v450
        %559 = vmatpush1.msra.mxu0 %v449
        %560 = vmatprep.subr.mxu0 %v452
        %561 = vmatpush1.msra.mxu0 %v451
        %562 = vmatprep.subr.mxu0 %v454
        %563 = vmatpush1.msra.mxu0 %v453
        %564 = vmatprep.subr.mxu0 %v456
        %565 = vmatpush1.msra.mxu0 %v455
        %566 = vmatprep.subr.mxu0 %v458
        %567 = vmatpush1.msra.mxu0 %v457
        %568 = vmatprep.mubr.f32.mxu0 %v384
        %569 = vmatmul.mubr.f32.gmra.mrb[0].mxu0 %v383
        %v570 = vpop.f32.mrb[0].mxu0
        %v571 = vadd.f32 %v474, %v570
        %v572 = vpop.f32.mrb[0].mxu0
        %v573 = vadd.f32 %v474, %v572
        %574 = vmatprep.mubr.f32.mxu0 %v387
        %575 = vmatmul.mubr.f32.gmra.mrb[0].mxu0 %v386
        %v576 = vpop.f32.mrb[0].mxu0
        %v577 = vadd.f32 %v479, %v576
        %v578 = vpop.f32.mrb[0].mxu0
        %v579 = vadd.f32 %v479, %v578
        %580 = vmatprep.mubr.f32.mxu0 %v390
        %581 = vmatmul.mubr.f32.gmra.mrb[0].mxu0 %v389
        %v582 = vpop.f32.mrb[0].mxu0
        %v583 = vadd.f32 %v484, %v582
        %v584 = vpop.f32.mrb[0].mxu0
        %v585 = vadd.f32 %v484, %v584
        %586 = vmatprep.mubr.f32.mxu0 %v393
        %587 = vmatmul.mubr.f32.gmra.mrb[0].mxu0 %v392
        %v588 = vpop.f32.mrb[0].mxu0
        %v589 = vadd.f32 %v489, %v588
        %v590 = vpop.f32.mrb[0].mxu0
        %v591 = vadd.f32 %v489, %v590
        %592 = vdwg.mxu0
        %593 = vmatprep.subr.mxu0 %v460
        %594 = vmatpush1.msra.mxu0 %v459
        %595 = vmatprep.subr.mxu0 %v462
        %596 = vmatpush1.msra.mxu0 %v461
        %597 = vmatprep.subr.mxu0 %v464
        %598 = vmatpush1.msra.mxu0 %v463
        %599 = vmatprep.subr.mxu0 %v466
        %600 = vmatpush1.msra.mxu0 %v465
        %601 = vmatprep.subr.mxu0 0.0
        %602 = vmatpush1.msra.mxu0 0.0
        %603 = vmatprep.subr.mxu0 0.0
        %604 = vmatpush1.msra.mxu0 0.0
        %605 = vmatprep.subr.mxu0 0.0
        %606 = vmatpush1.msra.mxu0 0.0
        %607 = vmatprep.subr.mxu0 0.0
        %608 = vmatpush1.msra.mxu0 0.0
        %609 = vmatprep.subr.mxu0 0.0
        %610 = vmatpush1.msra.mxu0 0.0
        %611 = vmatprep.subr.mxu0 0.0
        %612 = vmatpush1.msra.mxu0 0.0
        %613 = vmatprep.subr.mxu0 0.0
        %614 = vmatpush1.msra.mxu0 0.0
        %615 = vmatprep.subr.mxu0 0.0
        %616 = vmatpush1.msra.mxu0 0.0
        %617 = vmatprep.subr.mxu0 0.0
        %618 = vmatpush1.msra.mxu0 0.0
        %619 = vmatprep.subr.mxu0 0.0
        %620 = vmatpush1.msra.mxu0 0.0
        %621 = vmatprep.subr.mxu0 0.0
        %622 = vmatpush1.msra.mxu0 0.0
        %623 = vmatprep.subr.mxu0 0.0
        %624 = vmatpush1.msra.mxu0 0.0
        %625 = vmatprep.subr.mxu0 0.0
        %626 = vmatpush1.msra.mxu0 0.0
        %627 = vmatprep.subr.mxu0 0.0
        %628 = vmatpush1.msra.mxu0 0.0
        %629 = vmatprep.subr.mxu0 0.0
        %630 = vmatpush1.msra.mxu0 0.0
        %631 = vmatprep.subr.mxu0 0.0
        %632 = vmatpush1.msra.mxu0 0.0
        %633 = vmatprep.subr.mxu0 0.0
        %634 = vmatpush1.msra.mxu0 0.0
        %635 = vmatprep.subr.mxu0 0.0
        %636 = vmatpush1.msra.mxu0 0.0
        %637 = vmatprep.subr.mxu0 0.0
        %638 = vmatpush1.msra.mxu0 0.0
        %639 = vmatprep.subr.mxu0 0.0
        %640 = vmatpush1.msra.mxu0 0.0
        %641 = vmatprep.subr.mxu0 0.0
        %642 = vmatpush1.msra.mxu0 0.0
        %643 = vmatprep.subr.mxu0 0.0
        %644 = vmatpush1.msra.mxu0 0.0
        %645 = vmatprep.subr.mxu0 0.0
        %646 = vmatpush1.msra.mxu0 0.0
        %647 = vmatprep.subr.mxu0 0.0
        %648 = vmatpush1.msra.mxu0 0.0
        %649 = vmatprep.subr.mxu0 0.0
        %650 = vmatpush1.msra.mxu0 0.0
        %651 = vmatprep.subr.mxu0 0.0
        %652 = vmatpush1.msra.mxu0 0.0
        %653 = vmatprep.subr.mxu0 0.0
        %654 = vmatpush1.msra.mxu0 0.0
        %655 = vmatprep.subr.mxu0 0.0
        %656 = vmatpush1.msra.mxu0 0.0
        %657 = vmatprep.mubr.f32.mxu0 0.0
        %658 = vmatmul.mubr.f32.gmra.mrb[0].mxu0 %v493
        %v659 = vpop.f32.mrb[0].mxu0
        %v660 = vadd.f32 %v571, %v659
        %v661 = vpop.f32.mrb[0].mxu0
        %v662 = vadd.f32 %v573, %v661
        %663 = vmatprep.mubr.f32.mxu0 0.0
        %664 = vmatmul.mubr.f32.gmra.mrb[0].mxu0 %v496
        %v665 = vpop.f32.mrb[0].mxu0
        %v666 = vadd.f32 %v577, %v665
        %v667 = vpop.f32.mrb[0].mxu0
        %v668 = vadd.f32 %v579, %v667
        %669 = vmatprep.mubr.f32.mxu0 0.0
        %670 = vmatmul.mubr.f32.gmra.mrb[0].mxu0 %v499
        %v671 = vpop.f32.mrb[0].mxu0
        %v672 = vadd.f32 %v583, %v671
        %v673 = vpop.f32.mrb[0].mxu0
        %v674 = vadd.f32 %v585, %v673
        %675 = vmatprep.mubr.f32.mxu0 0.0
        %676 = vmatmul.mubr.f32.gmra.mrb[0].mxu0 %v502
        %v677 = vpop.f32.mrb[0].mxu0
        %v678 = vadd.f32 %v589, %v677
        %v679 = vpop.f32.mrb[0].mxu0
        %v680 = vadd.f32 %v591, %v679
        %681 = vdwg.mxu0
        %v682 = vmax.f32 %v660, 0.0
        %v683 = vmax.f32 %v662, 0.0
        %v684 = vmax.f32 %v666, 0.0
        %v685 = vmax.f32 %v668, 0.0
        %v686 = vmax.f32 %v672, 0.0
        %v687 = vmax.f32 %v674, 0.0
        %v688 = vmax.f32 %v678, 0.0
        %v689 = vmax.f32 %v680, 0.0
        %v690 = vld [vmem:[%s3] sm:$0xff]
        %v691 = vld [vmem:[%s3 + $0x8] sm:$0xff]
        %v692 = vld [vmem:[%s4] sm:$0xff]
        %v693 = vld [vmem:[%s4 + $0x8] sm:$0xff]
        %695 = vset.pattern.permute.xlu0 0
        %696 = vperm.xlu0 %695, %v692
        %v697 = vpop.permute.xlu0 %696
        %700 = vset.pattern.permute.xlu0 0
        %701 = vperm.xlu0 %700, %v693
        %v702 = vpop.permute.xlu0 %701
        %v705 = vsel %vm491, %v690, 0
        %v708 = vsel %vm491, %v691, 0
        %710 = vmatprep.subr.mxu0 %v683
        %711 = vmatpush1.msra.mxu0 %v682
        %712 = vmatprep.subr.mxu0 %v685
        %713 = vmatpush1.msra.mxu0 %v684
        %714 = vmatprep.subr.mxu0 %v687
        %715 = vmatpush1.msra.mxu0 %v686
        %716 = vmatprep.subr.mxu0 %v689
        %717 = vmatpush1.msra.mxu0 %v688
        %718 = vmatprep.subr.mxu0 0.0
        %719 = vmatpush1.msra.mxu0 0.0
        %720 = vmatprep.subr.mxu0 0.0
        %721 = vmatpush1.msra.mxu0 0.0
        %722 = vmatprep.subr.mxu0 0.0
        %723 = vmatpush1.msra.mxu0 0.0
        %724 = vmatprep.subr.mxu0 0.0
        %725 = vmatpush1.msra.mxu0 0.0
        %726 = vmatprep.subr.mxu0 0.0
        %727 = vmatpush1.msra.mxu0 0.0
        %728 = vmatprep.subr.mxu0 0.0
        %729 = vmatpush1.msra.mxu0 0.0
        %730 = vmatprep.subr.mxu0 0.0
        %731 = vmatpush1.msra.mxu0 0.0
        %732 = vmatprep.subr.mxu0 0.0
        %733 = vmatpush1.msra.mxu0 0.0
        %734 = vmatprep.subr.mxu0 0.0
        %735 = vmatpush1.msra.mxu0 0.0
        %736 = vmatprep.subr.mxu0 0.0
        %737 = vmatpush1.msra.mxu0 0.0
        %738 = vmatprep.subr.mxu0 0.0
        %739 = vmatpush1.msra.mxu0 0.0
        %740 = vmatprep.subr.mxu0 0.0
        %741 = vmatpush1.msra.mxu0 0.0
        %742 = vmatprep.subr.mxu0 0.0
        %743 = vmatpush1.msra.mxu0 0.0
        %744 = vmatprep.subr.mxu0 0.0
        %745 = vmatpush1.msra.mxu0 0.0
        %746 = vmatprep.subr.mxu0 0.0
        %747 = vmatpush1.msra.mxu0 0.0
        %748 = vmatprep.subr.mxu0 0.0
        %749 = vmatpush1.msra.mxu0 0.0
        %750 = vmatprep.subr.mxu0 0.0
        %751 = vmatpush1.msra.mxu0 0.0
        %752 = vmatprep.subr.mxu0 0.0
        %753 = vmatpush1.msra.mxu0 0.0
        %754 = vmatprep.subr.mxu0 0.0
        %755 = vmatpush1.msra.mxu0 0.0
        %756 = vmatprep.subr.mxu0 0.0
        %757 = vmatpush1.msra.mxu0 0.0
        %758 = vmatprep.subr.mxu0 0.0
        %759 = vmatpush1.msra.mxu0 0.0
        %760 = vmatprep.subr.mxu0 0.0
        %761 = vmatpush1.msra.mxu0 0.0
        %762 = vmatprep.subr.mxu0 0.0
        %763 = vmatpush1.msra.mxu0 0.0
        %764 = vmatprep.subr.mxu0 0.0
        %765 = vmatpush1.msra.mxu0 0.0
        %766 = vmatprep.subr.mxu0 0.0
        %767 = vmatpush1.msra.mxu0 0.0
        %768 = vmatprep.subr.mxu0 0.0
        %769 = vmatpush1.msra.mxu0 0.0
        %770 = vmatprep.subr.mxu0 0.0
        %771 = vmatpush1.msra.mxu0 0.0
        %772 = vmatprep.subr.mxu0 0.0
        %773 = vmatpush1.msra.mxu0 0.0
        %774 = vmatprep.mubr.f32.mxu0 0.0
        %775 = vmatmul.mubr.f32.gmra.mrb[0].mxu0 %v705
        %v776 = vpop.f32.mrb[0].mxu0
        %v777 = vadd.f32 %v697, %v776
        %v778 = vpop.f32.mrb[0].mxu0
        %v779 = vadd.f32 %v697, %v778
        %780 = vmatprep.mubr.f32.mxu0 0.0
        %781 = vmatmul.mubr.f32.gmra.mrb[0].mxu0 %v708
        %v782 = vpop.f32.mrb[0].mxu0
        %v783 = vadd.f32 %v702, %v782
        %v784 = vpop.f32.mrb[0].mxu0
        %v785 = vadd.f32 %v702, %v784
        %786 = vdwg.mxu0
        %787 = vst [vmem:[%s380] sm:$0xff] %v777
        %788 = vst [vmem:[%s380 + $0x8] sm:$0xff] %v779
        %789 = vst [vmem:[%s380 + $0x10] sm:$0xff] %v783
        %790 = vst [vmem:[%s380 + $0x18] sm:$0xff] %v785
        %s791 = sand.u32 %s134, 1
        %s792 = sand.u32 %s134, 1
        %s793 = smul.addr %s792, 32
        %s794 = scalar_lea.vmem [#allocation3], %s793
        // Predicated region
        $region64: #{_lambda_.1} parent=58 // pred_check
          %p795 = pneg %p144
        $region65: #{_lambda_.1} parent=58 // pred_check_branch
          %797 = sbr.rel (%p795) target = $region67
        $region66: #{_lambda_.1} parent=58 // pred_region
          %s798 = smul.u32 2, %s16
          %s799 = smul.addr %s798, 8
          %s800 = scalar_lea.vmem %s5, %s799
          // Predicated region
          $region68: #{_lambda_.1} parent=66 // pred_check
            _
          $region69: #{_lambda_.1} parent=66 // pred_check_branch
            %802 = sbr.rel (0) target = $region71
          $region70: #{_lambda_.1} parent=66 // pred_region
            // Predicated region
            $region72: #{_lambda_.1} parent=70 // pred_check
              _
            $region73: #{_lambda_.1} parent=70 // pred_check_branch
              %804 = sbr.rel (0) target = $region75
            $region74: #{_lambda_.1} parent=70 // pred_region
              loop: start=0, step=1, limit=1
              $region76: #{_lambda_.1} parent=74 // loop_pre_header
                _
              $region77: #{_lambda_.1} parent=74 // loop_header
                %s806 = sphi 0, %s810
                %p807 = scmp.ge.s32.totalorder %s806, 1
                %s811 = sphi %s794, %s794
                %s812 = sphi %s800, %s800
              $region78: #{_lambda_.1} parent=74 // loop_header_branch
                %809 = sbr.rel (%p807) target = $region82
              $region79: #{_lambda_.1} parent=74 // loop_body
                %v813 = vld [vmem:[%s811] sm:$0xff]
                %814 = vst [vmem:[%s812] sm:$0xff] %v813
                %v815 = vld [vmem:[%s811 + $0x8] sm:$0xff]
                %816 = vst [vmem:[%s812 + $0x8] sm:$0xff] %v815
                %v817 = vld [vmem:[%s811 + $0x10] sm:$0xff]
                %818 = vst [vmem:[%s812 + $0x20] sm:$0xff] %v817
                %v819 = vld [vmem:[%s811 + $0x18] sm:$0xff]
                %820 = vst [vmem:[%s812 + $0x28] sm:$0xff] %v819
              $region80: #{_lambda_.1} parent=74 // loop_footer
                %s810 = sadd.s32 1, %s806
              $region81: #{_lambda_.1} parent=74 // loop_footer_branch
                %805 = sbr.rel target = $region77
              $region82: #{_lambda_.1} parent=74 // loop_exit
                _
            $region75: #{_lambda_.1} parent=70 // pred_fallthru
              _
            // Predicated region
            $region83: #{_lambda_.1} parent=70 // pred_check
              _
            $region84: #{_lambda_.1} parent=70 // pred_check_branch
              %822 = sbr.rel target = $region86
            $region85: #{_lambda_.1} parent=70 // pred_region
              _
            $region86: #{_lambda_.1} parent=70 // pred_fallthru
              _
          $region71: #{_lambda_.1} parent=66 // pred_fallthru
            _
          %823 = vnop
        $region67: #{_lambda_.1} parent=58 // pred_fallthru
          _
      $region59: #{_lambda_.1} parent=5 // pred_fallthru
        _
      %p824 = scmp.le.s32.totalorder 2, %s11
      // Predicated region
      $region87: #{_lambda_.1} parent=5 // pred_check
        %p825 = pneg %p824
      $region88: #{_lambda_.1} parent=5 // pred_check_branch
        %827 = sbr.rel (%p825) target = $region90
      $region89: #{_lambda_.1} parent=5 // pred_region
        %s828 = ssub.s32 %s11, 2
        // Predicated region
        $region91: #{_lambda_.1} parent=89 // pred_check
          %p829 = pneg %p150
        $region92: #{_lambda_.1} parent=89 // pred_check_branch
          %831 = sbr.rel (%p829) target = $region94
        $region93: #{_lambda_.1} parent=89 // pred_region
          %s832 = sand.u32 %s135, 1
          %s833 = sand.u32 %s135, 1
          %s834 = smul.addr %s833, 32
          %s835 = scalar_lea.vmem [#allocation3], %s834
        $region94: #{_lambda_.1} parent=89 // pred_fallthru
          _
      $region90: #{_lambda_.1} parent=5 // pred_fallthru
        _
    $region6: #{_lambda_.1} parent=1 // loop_footer
      %s15 = sadd.s32 1, %s11
    $region7: #{_lambda_.1} parent=1 // loop_footer_branch
      %10 = sbr.rel target = $region3
    $region8: #{_lambda_.1} parent=1 // loop_exit
      _

</llo_original>
